<compile_context>
chip_gen: v7x
topology: tpu7x:2x2x1
jax: 0.10.0
libtpu: 0.0.40
codegen_flags: <defaults>
</compile_context>

<pallas_src>
import functools

import jax
import jax.numpy as jnp
from jax.experimental import pallas as pl
from jax.experimental.pallas import tpu as pltpu


def _round_up(x, m):
    return ((x + m - 1) // m) * m


def _joint_loss_kernel(batch, tb, cp_ref, ct_ref, yp_ref, yl_ref, out_ref):
    """One grid step over `tb` batch rows.

    cp_ref / ct_ref : (tb, n_concepts) concept logits / binary targets
    yp_ref          : (tb, n_classes) task logits
    yl_ref          : (tb, 1) int32 labels (padded rows masked by row index)
    out_ref         : (8, 128) f32 partial-result block:
                      [0, 0] = BCE partial sum
                      [0, 1] = CE partial sum
                      [0, 2] = valid-label count
    """
    i = pl.program_id(0)

    # ---------------- concept loss: BCE-with-logits, partial sum ----------------
    x = cp_ref[...].astype(jnp.float32)          # (tb, n_concepts)
    t = ct_ref[...].astype(jnp.float32)          # (tb, n_concepts)
    # numerically-stable BCE with logits: max(x,0) - x*t + log(1 + exp(-|x|))
    bce = jnp.maximum(x, 0.0) - x * t + jnp.log1p(jnp.exp(-jnp.abs(x)))
    row_c = i * tb + jax.lax.broadcasted_iota(jnp.int32, x.shape, 0)
    bce_part = jnp.sum(jnp.where(row_c < batch, bce, 0.0))

    # ---------------- task loss: CrossEntropy, partial sum ----------------------
    logits = yp_ref[...].astype(jnp.float32)     # (tb, C)
    tb_s, n_classes = logits.shape
    m = jnp.max(logits, axis=-1, keepdims=True)
    lse = jnp.log(jnp.sum(jnp.exp(logits - m), axis=-1, keepdims=True)) + m  # (tb,1)
    labels = yl_ref[...]                                                     # (tb,1)
    col = jax.lax.broadcasted_iota(jnp.int32, (tb_s, n_classes), 1)
    picked = jnp.sum(jnp.where(col == labels, logits, 0.0),
                     axis=-1, keepdims=True)                                 # (tb,1)
    row_t = i * tb + jax.lax.broadcasted_iota(jnp.int32, (tb_s, 1), 0)
    valid = (row_t < batch) & (labels != -100)                               # (tb,1)
    ce_part = jnp.sum(jnp.where(valid, lse - picked, 0.0))
    cnt_part = jnp.sum(valid.astype(jnp.float32))

    # ---------------- write partials into a lane-dense (8,128) block ------------
    rr = jax.lax.broadcasted_iota(jnp.int32, (8, 128), 0)
    ll = jax.lax.broadcasted_iota(jnp.int32, (8, 128), 1)
    vals = jnp.where(ll == 0, bce_part, jnp.where(ll == 1, ce_part, cnt_part))
    out_ref[...] = jnp.where((rr == 0) & (ll < 3), vals, 0.0)


def joint_loss(c_pred, c, y_pred, y, *, alpha, beta=1.0, tile_b=1024):
    """Returns (loss, concept_loss, task_loss) as float32 scalars.

    Mirrors JointLoss.forward with use_concept_logit=True, use_triplet_loss=False.
    """
    B, n_concepts = c_pred.shape
    _, n_classes = y_pred.shape

    # ---- batch tiling: tb rows per grid step, batch padded to a multiple ----
    tb = _round_up(min(tile_b, _round_up(B, 8)), 8)
    padded_b = _round_up(B, tb)
    num_tiles = padded_b // tb
    pad_rows = padded_b - B

    def pad_b(a):
        return jnp.pad(a, ((0, pad_rows), (0, 0))) if pad_rows else a

    cp2 = pad_b(c_pred)
    ct2 = pad_b(c)
    yp2 = pad_b(y_pred)
    yl2 = pad_b(y.astype(jnp.int32).reshape(-1, 1))

    kernel = functools.partial(_joint_loss_kernel, B, tb)

    in_bytes = (cp2.size * cp2.dtype.itemsize + ct2.size * ct2.dtype.itemsize
                + yp2.size * yp2.dtype.itemsize + yl2.size * 4)
    out_bytes = num_tiles * 8 * 128 * 4
    cost = pl.CostEstimate(
        flops=6 * B * n_concepts + 5 * B * n_classes,
        transcendentals=2 * B * n_concepts + B * (n_classes + 1),
        bytes_accessed=in_bytes + out_bytes,
    )

    partials = pl.pallas_call(
        kernel,
        out_shape=jax.ShapeDtypeStruct((num_tiles * 8, 128), jnp.float32),
        grid=(num_tiles,),
        in_specs=[
            pl.BlockSpec((tb, n_concepts), lambda i: (i, 0)),  # concept logits
            pl.BlockSpec((tb, n_concepts), lambda i: (i, 0)),  # concept targets
            pl.BlockSpec((tb, n_classes), lambda i: (i, 0)),   # task logits
            pl.BlockSpec((tb, 1), lambda i: (i, 0)),           # labels
        ],
        out_specs=pl.BlockSpec((8, 128), lambda i: (i, 0)),
        compiler_params=pltpu.CompilerParams(
            dimension_semantics=("parallel",)),
        cost_estimate=cost,
    )(cp2, ct2, yp2, yl2)

    # ---- tiny epilogue reduction + weight combine in plain JAX ----
    p = partials.reshape(num_tiles, 8, 128)
    bce_sum = jnp.sum(p[:, 0, 0])
    ce_sum = jnp.sum(p[:, 0, 1])
    n_valid = jnp.sum(p[:, 0, 2])
    concept_loss = bce_sum / (B * n_concepts)
    task_loss = ce_sum / n_valid       # n_valid == B when no ignore_index labels
    alpha = jnp.asarray(alpha, jnp.float32)
    beta = jnp.asarray(beta, jnp.float32)
    loss = alpha * concept_loss + beta * task_loss
    return loss, concept_loss, task_loss


def _reference(c_pred, c, y_pred, y, alpha, beta):
    # pure-JAX reference mirroring torch BCEWithLogitsLoss + CrossEntropyLoss
    x = c_pred.astype(jnp.float32)
    ct = c.astype(jnp.float32)
    bce = jnp.maximum(x, 0.0) - x * ct + jnp.log1p(jnp.exp(-jnp.abs(x)))
    concept_loss = jnp.mean(bce)
    logits = y_pred.astype(jnp.float32)
    logp = jax.nn.log_softmax(logits, axis=-1)
    task_loss = -jnp.mean(jnp.take_along_axis(logp, y[:, None].astype(jnp.int32), axis=-1))
    return alpha * concept_loss + beta * task_loss, concept_loss, task_loss


if __name__ == "__main__":
    key = jax.random.PRNGKey(0)
    k1, k2, k3, k4 = jax.random.split(key, 4)

    B, n_concepts, n_classes = 13, 12, 10
    alpha, beta = 0.5, 1.0

    c_pred = jax.random.normal(k1, (B, n_concepts), dtype=jnp.float32)
    c = jax.random.bernoulli(k2, 0.5, (B, n_concepts)).astype(jnp.float32)
    y_pred = jax.random.normal(k3, (B, n_classes), dtype=jnp.float32)
    y = jax.random.randint(k4, (B,), 0, n_classes, dtype=jnp.int32)

    # tile_b=8 forces multiple grid steps + batch padding at this toy size so the
    # tiling / masking / partial-sum paths are all exercised.
    loss, closs, tloss = joint_loss(c_pred, c, y_pred, y,
                                    alpha=alpha, beta=beta, tile_b=8)
    jax.block_until_ready(loss)

    ref_loss, ref_closs, ref_tloss = _reference(c_pred, c, y_pred, y, alpha, beta)
    assert jnp.allclose(loss, ref_loss, rtol=1e-5, atol=1e-5), (loss, ref_loss)
    assert jnp.allclose(closs, ref_closs, rtol=1e-5, atol=1e-5), (closs, ref_closs)
    assert jnp.allclose(tloss, ref_tloss, rtol=1e-5, atol=1e-5), (tloss, ref_tloss)

    # Single-tile (no padding) path with default tile size.
    loss2, closs2, tloss2 = joint_loss(c_pred, c, y_pred, y, alpha=alpha, beta=beta)
    jax.block_until_ready(loss2)
    assert jnp.allclose(loss2, ref_loss, rtol=1e-5, atol=1e-5), (loss2, ref_loss)

    # bf16 pass-through smoke test (no wrapper upcast; kernel computes in f32).
    loss_bf16, _, _ = joint_loss(c_pred.astype(jnp.bfloat16),
                                 c.astype(jnp.bfloat16),
                                 y_pred.astype(jnp.bfloat16),
                                 y, alpha=alpha, beta=beta)
    jax.block_until_ready(loss_bf16)
    assert jnp.allclose(loss_bf16, ref_loss, rtol=3e-2, atol=3e-2), (loss_bf16, ref_loss)

    print("KERNEL_OK")
</pallas_src>

<mosaic_0001>
module attributes {stable_mosaic.version = 11 : i64} {
  func.func @_joint_loss_kernel(%arg0: i32, %arg1: memref<8x12xf32, #tpu.memory_space<vmem>>, %arg2: memref<8x12xf32, #tpu.memory_space<vmem>>, %arg3: memref<8x10xf32, #tpu.memory_space<vmem>>, %arg4: memref<8x1xi32, #tpu.memory_space<vmem>>, %arg5: memref<8x128xf32, #tpu.memory_space<vmem>>) attributes {dimension_semantics = [#tpu.dimension_semantics<parallel>], iteration_bounds = array<i64: 2>, scalar_prefetch = 0 : i64, scratch_operands = 0 : i64, tpu.core_type = #tpu.core_type<tc>, window_params = [{transform_indices = @transform_0, window_bounds = array<i64: 8, 12>}, {transform_indices = @transform_1, window_bounds = array<i64: 8, 12>}, {transform_indices = @transform_2, window_bounds = array<i64: 8, 10>}, {transform_indices = @transform_3, window_bounds = array<i64: 8, 1>}, {transform_indices = @transform_4, window_bounds = array<i64: 8, 128>}]} {
    %c0 = arith.constant 0 : index
    %c0_0 = arith.constant 0 : index
    %0 = vector.load %arg1[%c0, %c0_0] : memref<8x12xf32, #tpu.memory_space<vmem>>, vector<8x12xf32>
    %c0_1 = arith.constant 0 : index
    %c0_2 = arith.constant 0 : index
    %1 = vector.load %arg2[%c0_1, %c0_2] : memref<8x12xf32, #tpu.memory_space<vmem>>, vector<8x12xf32>
    %cst = arith.constant 0.000000e+00 : f32
    %2 = vector.broadcast %cst : f32 to vector<8x12xf32>
    %3 = arith.maximumf %0, %2 : vector<8x12xf32>
    %4 = arith.mulf %0, %1 : vector<8x12xf32>
    %5 = arith.subf %3, %4 : vector<8x12xf32>
    %6 = math.absf %0 : vector<8x12xf32>
    %cst_3 = arith.constant 0.000000e+00 : f32
    %7 = vector.broadcast %cst_3 : f32 to vector<8x12xf32>
    %8 = arith.subf %7, %6 : vector<8x12xf32>
    %9 = math.exp %8 : vector<8x12xf32>
    %10 = math.log1p %9 : vector<8x12xf32>
    %11 = arith.addf %5, %10 : vector<8x12xf32>
    %c8_i32 = arith.constant 8 : i32
    %12 = arith.muli %arg0, %c8_i32 : i32
    %13 = tpu.iota {dimensions = array<i32: 0>} : vector<8x12xi32>
    %14 = vector.broadcast %12 : i32 to vector<8x12xi32>
    %15 = arith.addi %14, %13 : vector<8x12xi32>
    %c13_i32 = arith.constant 13 : i32
    %16 = vector.broadcast %c13_i32 : i32 to vector<8x12xi32>
    %17 = arith.cmpi slt, %15, %16 : vector<8x12xi32>
    %cst_4 = arith.constant 0.000000e+00 : f32
    %18 = vector.broadcast %cst_4 : f32 to vector<8x12xf32>
    %19 = arith.select %17, %11, %18 : vector<8x12xi1>, vector<8x12xf32>
    %20 = vector.shape_cast %19 : vector<8x12xf32> to vector<1x8x12xf32>
    %cst_5 = arith.constant dense<0.000000e+00> : vector<1xf32>
    %21 = vector.multi_reduction <add>, %20, %cst_5 [1, 2] : vector<1x8x12xf32> to vector<1xf32>
    %22 = vector.shape_cast %21 : vector<1xf32> to vector<1x1x1xf32>
    %23 = vector.extract %22[0, 0, 0] : f32 from vector<1x1x1xf32>
    %c0_6 = arith.constant 0 : index
    %c0_7 = arith.constant 0 : index
    %24 = vector.load %arg3[%c0_6, %c0_7] : memref<8x10xf32, #tpu.memory_space<vmem>>, vector<8x10xf32>
    %cst_8 = arith.constant dense<0xFF800000> : vector<8xf32>
    %25 = vector.multi_reduction <maximumf>, %24, %cst_8 [1] : vector<8x10xf32> to vector<8xf32>
    %26 = vector.shape_cast %25 : vector<8xf32> to vector<8x1xf32>
    %27 = vector.broadcast %26 : vector<8x1xf32> to vector<8x10xf32>
    %28 = arith.subf %24, %27 : vector<8x10xf32>
    %29 = math.exp %28 : vector<8x10xf32>
    %cst_9 = arith.constant dense<0.000000e+00> : vector<8xf32>
    %30 = vector.multi_reduction <add>, %29, %cst_9 [1] : vector<8x10xf32> to vector<8xf32>
    %31 = vector.shape_cast %30 : vector<8xf32> to vector<8x1xf32>
    %32 = math.log %31 : vector<8x1xf32>
    %33 = arith.addf %32, %26 : vector<8x1xf32>
    %c0_10 = arith.constant 0 : index
    %c0_11 = arith.constant 0 : index
    %34 = vector.load %arg4[%c0_10, %c0_11] : memref<8x1xi32, #tpu.memory_space<vmem>>, vector<8x1xi32>
    %35 = tpu.iota {dimensions = array<i32: 1>} : vector<8x10xi32>
    %36 = vector.broadcast %34 : vector<8x1xi32> to vector<8x10xi32>
    %37 = arith.cmpi eq, %35, %36 : vector<8x10xi32>
    %cst_12 = arith.constant 0.000000e+00 : f32
    %38 = vector.broadcast %cst_12 : f32 to vector<8x10xf32>
    %39 = arith.select %37, %24, %38 : vector<8x10xi1>, vector<8x10xf32>
    %cst_13 = arith.constant dense<0.000000e+00> : vector<8xf32>
    %40 = vector.multi_reduction <add>, %39, %cst_13 [1] : vector<8x10xf32> to vector<8xf32>
    %41 = vector.shape_cast %40 : vector<8xf32> to vector<8x1xf32>
    %c8_i32_14 = arith.constant 8 : i32
    %42 = arith.muli %arg0, %c8_i32_14 : i32
    %43 = tpu.iota {dimensions = array<i32: 0>} : vector<8x1xi32>
    %44 = vector.broadcast %42 : i32 to vector<8x1xi32>
    %45 = arith.addi %44, %43 : vector<8x1xi32>
    %c13_i32_15 = arith.constant 13 : i32
    %46 = vector.broadcast %c13_i32_15 : i32 to vector<8x1xi32>
    %47 = arith.cmpi slt, %45, %46 : vector<8x1xi32>
    %c-100_i32 = arith.constant -100 : i32
    %48 = vector.broadcast %c-100_i32 : i32 to vector<8x1xi32>
    %49 = arith.cmpi ne, %34, %48 : vector<8x1xi32>
    %50 = arith.andi %47, %49 : vector<8x1xi1>
    %51 = arith.subf %33, %41 : vector<8x1xf32>
    %cst_16 = arith.constant 0.000000e+00 : f32
    %52 = vector.broadcast %cst_16 : f32 to vector<8x1xf32>
    %53 = arith.select %50, %51, %52 : vector<8x1xi1>, vector<8x1xf32>
    %54 = vector.shape_cast %53 : vector<8x1xf32> to vector<1x8x1xf32>
    %cst_17 = arith.constant dense<0.000000e+00> : vector<1xf32>
    %55 = vector.multi_reduction <add>, %54, %cst_17 [1, 2] : vector<1x8x1xf32> to vector<1xf32>
    %56 = vector.shape_cast %55 : vector<1xf32> to vector<1x1x1xf32>
    %57 = vector.extract %56[0, 0, 0] : f32 from vector<1x1x1xf32>
    %58 = arith.extui %50 : vector<8x1xi1> to vector<8x1xi32>
    %59 = arith.sitofp %58 : vector<8x1xi32> to vector<8x1xf32>
    %60 = vector.shape_cast %59 : vector<8x1xf32> to vector<1x8x1xf32>
    %cst_18 = arith.constant dense<0.000000e+00> : vector<1xf32>
    %61 = vector.multi_reduction <add>, %60, %cst_18 [1, 2] : vector<1x8x1xf32> to vector<1xf32>
    %62 = vector.shape_cast %61 : vector<1xf32> to vector<1x1x1xf32>
    %63 = vector.extract %62[0, 0, 0] : f32 from vector<1x1x1xf32>
    %64 = tpu.iota {dimensions = array<i32: 0>} : vector<8x128xi32>
    %65 = tpu.iota {dimensions = array<i32: 1>} : vector<8x128xi32>
    %c0_i32 = arith.constant 0 : i32
    %66 = vector.broadcast %c0_i32 : i32 to vector<8x128xi32>
    %67 = arith.cmpi eq, %65, %66 : vector<8x128xi32>
    %c1_i32 = arith.constant 1 : i32
    %68 = vector.broadcast %c1_i32 : i32 to vector<8x128xi32>
    %69 = arith.cmpi eq, %65, %68 : vector<8x128xi32>
    %70 = vector.broadcast %57 : f32 to vector<8x128xf32>
    %71 = vector.broadcast %63 : f32 to vector<8x128xf32>
    %72 = arith.select %69, %70, %71 : vector<8x128xi1>, vector<8x128xf32>
    %73 = vector.broadcast %23 : f32 to vector<8x128xf32>
    %74 = arith.select %67, %73, %72 : vector<8x128xi1>, vector<8x128xf32>
    %c0_i32_19 = arith.constant 0 : i32
    %75 = vector.broadcast %c0_i32_19 : i32 to vector<8x128xi32>
    %76 = arith.cmpi eq, %64, %75 : vector<8x128xi32>
    %c3_i32 = arith.constant 3 : i32
    %77 = vector.broadcast %c3_i32 : i32 to vector<8x128xi32>
    %78 = arith.cmpi slt, %65, %77 : vector<8x128xi32>
    %79 = arith.andi %76, %78 : vector<8x128xi1>
    %cst_20 = arith.constant 0.000000e+00 : f32
    %80 = vector.broadcast %cst_20 : f32 to vector<8x128xf32>
    %81 = arith.select %79, %74, %80 : vector<8x128xi1>, vector<8x128xf32>
    %c0_21 = arith.constant 0 : index
    %c0_22 = arith.constant 0 : index
    %82 = vector.load %arg5[%c0_21, %c0_22] : memref<8x128xf32, #tpu.memory_space<vmem>>, vector<8x128xf32>
    tpu.vector_store %arg5[%c0_21, %c0_22], %81 {strides = array<i32>} : memref<8x128xf32, #tpu.memory_space<vmem>>, vector<8x128xf32>,
    return
  }
  func.func @transform_0(%arg0: i32) -> (i32, i32) {
    %c0_i32 = arith.constant 0 : i32
    %c0_i32_0 = arith.constant 0 : i32
    return %arg0, %c0_i32 : i32, i32
  }
  func.func @transform_1(%arg0: i32) -> (i32, i32) {
    %c0_i32 = arith.constant 0 : i32
    %c0_i32_0 = arith.constant 0 : i32
    return %arg0, %c0_i32 : i32, i32
  }
  func.func @transform_2(%arg0: i32) -> (i32, i32) {
    %c0_i32 = arith.constant 0 : i32
    %c0_i32_0 = arith.constant 0 : i32
    return %arg0, %c0_i32 : i32, i32
  }
  func.func @transform_3(%arg0: i32) -> (i32, i32) {
    %c0_i32 = arith.constant 0 : i32
    %c0_i32_0 = arith.constant 0 : i32
    return %arg0, %c0_i32 : i32, i32
  }
  func.func @transform_4(%arg0: i32) -> (i32, i32) {
    %c0_i32 = arith.constant 0 : i32
    %c0_i32_0 = arith.constant 0 : i32
    return %arg0, %c0_i32 : i32, i32
  }
}

</mosaic_0001>

<llo_original>
// kernel: tpu_custom_call.1
$region0: #{tpu_custom_call.1}
  #allocation0 [shape = 'u32[]', space=smem, size = 0x4, offset = 0x4, fixed_abs, tag = 'smem constant byte address 0x4 - core index']
  #allocation1 [shape = 'u32[144,128]{1,0:T(1,128)}', space=vmem, size = 0x12000, scoped, tag = 'internal scratch']
  %s0 = inlined_call_operand.vmem [shape: f32[16,12], index: 0, kind: input, shape index: {}]
  %s1 = inlined_call_operand.hbm [shape: f32[16,12], index: 1, kind: input, shape index: {}]
  %s2 = inlined_call_operand.hbm [shape: f32[16,10], index: 2, kind: input, shape index: {}]
  %s3 = inlined_call_operand.vmem [shape: s32[16,1], index: 3, kind: input, shape index: {}]
  %s4 = inlined_call_operand.hbm [shape: f32[16,128], index: 4, kind: output, shape index: {}]
  %s5 = sld [smem:[#allocation0]]
  $region57: #{tpu_custom_call.1} parent=0
    _
  %s7 = ssub.s32 1, %s5
  %s8 = scalar_select 0, %s7, %s5
  $region1: #{tpu_custom_call.1} parent=0
    #allocation2 [shape = 'u8[8192]{0}', space=vmem, size = 0x2000, scoped, tag = 'input window, operand 1']
    #allocation3 [shape = 's32[2]{0}', space=sflag, size = 0x8, scoped, tag = 'scoped memory for tpu_custom_call.1']
    #allocation4 [shape = 's32[2]{0}', space=sflag, size = 0x8, scoped, tag = 'scoped memory for tpu_custom_call.1']
    #allocation5 [shape = 'u8[8192]{0}', space=vmem, size = 0x2000, scoped, tag = 'input window, operand 2']
    #allocation6 [shape = 's32[2]{0}', space=sflag, size = 0x8, scoped, tag = 'scoped memory for tpu_custom_call.1']
    #allocation7 [shape = 'u8[8192]{0}', space=vmem, size = 0x2000, scoped, tag = 'output window, operand 0']
    %9 = vsyncpa [#allocation3], 0
    %s10 = scalar_lea.sflag [#allocation3], 1
    %11 = vsyncpa %s10, 0
    %12 = vsyncpa [#allocation6], 0
    %s13 = scalar_lea.sflag [#allocation6], 1
    %14 = vsyncpa %s13, 0
    %15 = vsyncpa [#allocation4], 0
    %s16 = scalar_lea.sflag [#allocation4], 1
    %17 = vsyncpa %s16, 0
    loop: start=0, step=1, limit=4
    $region2: #{tpu_custom_call.1} parent=1 // loop_pre_header
      _
    $region3: #{tpu_custom_call.1} parent=1 // loop_header
      %s19 = sphi 0, %s23
      %p20 = scmp.ge.s32.totalorder %s19, 4
      %s29 = sphi 0, %s31
      %s32 = sphi 0, %s29
      %s33 = sphi 0, %s32
      %s49 = sphi 0, %s33
      %s55 = sphi 0, %s57
      %s58 = sphi 0, %s55
      %s59 = sphi 0, %s58
      %s75 = sphi 0, %s59
      %s81 = sphi 0, %s83
      %s84 = sphi 0, %s81
      %s85 = sphi 0, %s84
      %s101 = sphi 0, %s85
      %s107 = sphi 0, %s109
      %s110 = sphi 0, %s107
      %s111 = sphi 0, %s110
      %s127 = sphi 0, %s111
      %s133 = sphi 0, %s135
      %s136 = sphi 0, %s133
      %s137 = sphi 0, %s136
      %s153 = sphi 0, %s137
    $region4: #{tpu_custom_call.1} parent=1 // loop_header_branch
      %22 = sbr.rel (%p20) target = $region8
    $region5: #{tpu_custom_call.1} parent=1 // loop_body
      %s24 = ssub.s32 %s19, 1
      %s25 = ssub.s32 %s19, 2
      %s26 = sadd.s32 %s19, 1
      %s27 = ssub.s32 %s19, %s26
      %p28 = scmp.eq.s32.totalorder %s27, 0
      %s30 = sadd.s32 %s29, 1
      %s31 = scalar_select %p28, %s29, %s30
      %p34 = pneg %p28
      %p35 = scmp.eq.s32.totalorder %s19, 1
      %p36 = por %p34, %p35
      %p37 = scmp.ne.s32.totalorder %s29, %s32
      %p38 = scmp.eq.s32.totalorder %s19, 0
      %p39 = por %p37, %p38
      %p40 = scmp.ne.s32.totalorder %s29, %s32
      %p41 = scmp.eq.s32.totalorder %s24, 1
      %p42 = por %p40, %p41
      %p43 = scmp.ne.s32.totalorder %s32, %s33
      %p44 = scmp.eq.s32.totalorder %s24, 0
      %p45 = por %p43, %p44
      %p46 = scmp.ne.s32.totalorder %s32, %s33
      %p47 = scmp.eq.s32.totalorder %s25, 1
      %p48 = por %p46, %p47
      %p50 = scmp.ne.s32.totalorder %s33, %s49
      %p51 = scmp.eq.s32.totalorder %s25, 0
      %p52 = por %p50, %p51
      %s53 = ssub.s32 %s19, %s26
      %p54 = scmp.eq.s32.totalorder %s53, 0
      %s56 = sadd.s32 %s55, 1
      %s57 = scalar_select %p54, %s55, %s56
      %p60 = pneg %p54
      %p61 = scmp.eq.s32.totalorder %s19, 1
      %p62 = por %p60, %p61
      %p63 = scmp.ne.s32.totalorder %s55, %s58
      %p64 = scmp.eq.s32.totalorder %s19, 0
      %p65 = por %p63, %p64
      %p66 = scmp.ne.s32.totalorder %s55, %s58
      %p67 = scmp.eq.s32.totalorder %s24, 1
      %p68 = por %p66, %p67
      %p69 = scmp.ne.s32.totalorder %s58, %s59
      %p70 = scmp.eq.s32.totalorder %s24, 0
      %p71 = por %p69, %p70
      %p72 = scmp.ne.s32.totalorder %s58, %s59
      %p73 = scmp.eq.s32.totalorder %s25, 1
      %p74 = por %p72, %p73
      %p76 = scmp.ne.s32.totalorder %s59, %s75
      %p77 = scmp.eq.s32.totalorder %s25, 0
      %p78 = por %p76, %p77
      %s79 = ssub.s32 %s19, %s26
      %p80 = scmp.eq.s32.totalorder %s79, 0
      %s82 = sadd.s32 %s81, 1
      %s83 = scalar_select %p80, %s81, %s82
      %p86 = pneg %p80
      %p87 = scmp.eq.s32.totalorder %s19, 1
      %p88 = por %p86, %p87
      %p89 = scmp.ne.s32.totalorder %s81, %s84
      %p90 = scmp.eq.s32.totalorder %s19, 0
      %p91 = por %p89, %p90
      %p92 = scmp.ne.s32.totalorder %s81, %s84
      %p93 = scmp.eq.s32.totalorder %s24, 1
      %p94 = por %p92, %p93
      %p95 = scmp.ne.s32.totalorder %s84, %s85
      %p96 = scmp.eq.s32.totalorder %s24, 0
      %p97 = por %p95, %p96
      %p98 = scmp.ne.s32.totalorder %s84, %s85
      %p99 = scmp.eq.s32.totalorder %s25, 1
      %p100 = por %p98, %p99
      %p102 = scmp.ne.s32.totalorder %s85, %s101
      %p103 = scmp.eq.s32.totalorder %s25, 0
      %p104 = por %p102, %p103
      %s105 = ssub.s32 %s19, %s26
      %p106 = scmp.eq.s32.totalorder %s105, 0
      %s108 = sadd.s32 %s107, 1
      %s109 = scalar_select %p106, %s107, %s108
      %p112 = pneg %p106
      %p113 = scmp.eq.s32.totalorder %s19, 1
      %p114 = por %p112, %p113
      %p115 = scmp.ne.s32.totalorder %s107, %s110
      %p116 = scmp.eq.s32.totalorder %s19, 0
      %p117 = por %p115, %p116
      %p118 = scmp.ne.s32.totalorder %s107, %s110
      %p119 = scmp.eq.s32.totalorder %s24, 1
      %p120 = por %p118, %p119
      %p121 = scmp.ne.s32.totalorder %s110, %s111
      %p122 = scmp.eq.s32.totalorder %s24, 0
      %p123 = por %p121, %p122
      %p124 = scmp.ne.s32.totalorder %s110, %s111
      %p125 = scmp.eq.s32.totalorder %s25, 1
      %p126 = por %p124, %p125
      %p128 = scmp.ne.s32.totalorder %s111, %s127
      %p129 = scmp.eq.s32.totalorder %s25, 0
      %p130 = por %p128, %p129
      %s131 = ssub.s32 %s19, %s26
      %p132 = scmp.eq.s32.totalorder %s131, 0
      %s134 = sadd.s32 %s133, 1
      %s135 = scalar_select %p132, %s133, %s134
      %p138 = pneg %p132
      %p139 = scmp.eq.s32.totalorder %s19, 1
      %p140 = por %p138, %p139
      %p141 = scmp.ne.s32.totalorder %s133, %s136
      %p142 = scmp.eq.s32.totalorder %s19, 0
      %p143 = por %p141, %p142
      %p144 = scmp.ne.s32.totalorder %s133, %s136
      %p145 = scmp.eq.s32.totalorder %s24, 1
      %p146 = por %p144, %p145
      %p147 = scmp.ne.s32.totalorder %s136, %s137
      %p148 = scmp.eq.s32.totalorder %s24, 0
      %p149 = por %p147, %p148
      %p150 = scmp.ne.s32.totalorder %s136, %s137
      %p151 = scmp.eq.s32.totalorder %s25, 1
      %p152 = por %p150, %p151
      %p154 = scmp.ne.s32.totalorder %s137, %s153
      %p155 = scmp.eq.s32.totalorder %s25, 0
      %p156 = por %p154, %p155
      %p157 = scmp.le.s32.totalorder 1, %s19
      %p158 = scmp.lt.s32.totalorder %s19, 3
      %p159 = pnand %p157, %p158
      %p160 = pneg %p159
      // Predicated region
      $region9: #{tpu_custom_call.1} parent=5 // pred_check
        _
      $region10: #{tpu_custom_call.1} parent=5 // pred_check_branch
        %162 = sbr.rel (%p159) target = $region12
      $region11: #{tpu_custom_call.1} parent=5 // pred_region
        %s163 = ssub.s32 %s19, 1
      $region12: #{tpu_custom_call.1} parent=5 // pred_fallthru
        _
      %p164 = scmp.lt.s32.totalorder %s19, 2
      // Predicated region
      $region13: #{tpu_custom_call.1} parent=5 // pred_check
        %p165 = pneg %p164
      $region14: #{tpu_custom_call.1} parent=5 // pred_check_branch
        %167 = sbr.rel (%p165) target = $region16
      $region15: #{tpu_custom_call.1} parent=5 // pred_region
        // Predicated region
        $region17: #{tpu_custom_call.1} parent=15 // pred_check
          %p168 = pneg %p39
        $region18: #{tpu_custom_call.1} parent=15 // pred_check_branch
          %170 = sbr.rel (%p168) target = $region20
        $region19: #{tpu_custom_call.1} parent=15 // pred_region
          %p171 = scmp.lt.s32.totalorder %s19, 1
          %s172 = scalar_select %p171, %s19, 1
          %s173 = smul.addr %s172, 8
          %s174 = scalar_lea.vmem %s0, %s173
        $region20: #{tpu_custom_call.1} parent=15 // pred_fallthru
          _
        // Predicated region
        $region21: #{tpu_custom_call.1} parent=15 // pred_check
          %p175 = pneg %p65
        $region22: #{tpu_custom_call.1} parent=15 // pred_check_branch
          %177 = sbr.rel (%p175) target = $region24
        $region23: #{tpu_custom_call.1} parent=15 // pred_region
          %s178 = sand.u32 %s55, 1
          %s179 = scalar_lea.sflag [#allocation3], %s178
          %s180 = sand.u32 %s55, 1
          %s181 = smul.addr %s180, 8
          %s182 = scalar_lea.vmem [#allocation2], %s181
          %s184 = ssub.s32 128, 128
          %185 = vsyncadd %s179, %s184
          %s186 = smul.addr %s19, 128
          %s187 = scalar_lea.hbm %s1, %s186
          %s189 = sshll.u32 %s182, 4
          %s190 = int_to_ptr.vmem [resolvable:$true] %s189
          %192 = dma.hbm_to_vmem [thread:$0]  %s187, 128, %s190, %s179
        $region24: #{tpu_custom_call.1} parent=15 // pred_fallthru
          _
        // Predicated region
        $region25: #{tpu_custom_call.1} parent=15 // pred_check
          %p193 = pneg %p91
        $region26: #{tpu_custom_call.1} parent=15 // pred_check_branch
          %195 = sbr.rel (%p193) target = $region28
        $region27: #{tpu_custom_call.1} parent=15 // pred_region
          %s196 = sand.u32 %s81, 1
          %s197 = scalar_lea.sflag [#allocation6], %s196
          %s198 = sand.u32 %s81, 1
          %s199 = smul.addr %s198, 8
          %s200 = scalar_lea.vmem [#allocation5], %s199
          %s202 = ssub.s32 128, 128
          %203 = vsyncadd %s197, %s202
          %s204 = smul.addr %s19, 128
          %s205 = scalar_lea.hbm %s2, %s204
          %s207 = sshll.u32 %s200, 4
          %s208 = int_to_ptr.vmem [resolvable:$true] %s207
          %210 = dma.hbm_to_vmem [thread:$0]  %s205, 128, %s208, %s197
        $region28: #{tpu_custom_call.1} parent=15 // pred_fallthru
          _
        // Predicated region
        $region29: #{tpu_custom_call.1} parent=15 // pred_check
          %p211 = pneg %p117
        $region30: #{tpu_custom_call.1} parent=15 // pred_check_branch
          %213 = sbr.rel (%p211) target = $region32
        $region31: #{tpu_custom_call.1} parent=15 // pred_region
          %p214 = scmp.lt.s32.totalorder %s19, 1
          %s215 = scalar_select %p214, %s19, 1
          %s216 = smul.addr %s215, 8
          %s217 = scalar_lea.vmem %s3, %s216
        $region32: #{tpu_custom_call.1} parent=15 // pred_fallthru
          _
      $region16: #{tpu_custom_call.1} parent=5 // pred_fallthru
        _
      %p218 = scmp.le.s32.totalorder 1, %s19
      %p219 = scmp.lt.s32.totalorder %s19, 3
      %p220 = pnand %p218, %p219
      %p221 = pneg %p220
      // Predicated region
      $region33: #{tpu_custom_call.1} parent=5 // pred_check
        _
      $region34: #{tpu_custom_call.1} parent=5 // pred_check_branch
        %223 = sbr.rel (%p220) target = $region36
      $region35: #{tpu_custom_call.1} parent=5 // pred_region
        %s224 = ssub.s32 %s19, 1
        %s225 = sand.u32 %s58, 1
        %s226 = scalar_lea.sflag [#allocation3], %s225
        %s227 = sand.u32 %s58, 1
        %s228 = smul.addr %s227, 8
        %s229 = scalar_lea.vmem [#allocation2], %s228
        // Predicated region
        $region37: #{tpu_custom_call.1} parent=35 // pred_check
          %p230 = pneg %p71
        $region38: #{tpu_custom_call.1} parent=35 // pred_check_branch
          %232 = sbr.rel (%p230) target = $region40
        $region39: #{tpu_custom_call.1} parent=35 // pred_region
          %233 = dma.done %s226, 128
        $region40: #{tpu_custom_call.1} parent=35 // pred_fallthru
          _
        %s234 = sand.u32 %s84, 1
        %s235 = scalar_lea.sflag [#allocation6], %s234
        %s236 = sand.u32 %s84, 1
        %s237 = smul.addr %s236, 8
        %s238 = scalar_lea.vmem [#allocation5], %s237
        // Predicated region
        $region41: #{tpu_custom_call.1} parent=35 // pred_check
          %p239 = pneg %p97
        $region42: #{tpu_custom_call.1} parent=35 // pred_check_branch
          %241 = sbr.rel (%p239) target = $region44
        $region43: #{tpu_custom_call.1} parent=35 // pred_region
          %242 = dma.done %s235, 128
        $region44: #{tpu_custom_call.1} parent=35 // pred_fallthru
          _
        %p243 = scmp.lt.s32.totalorder %s24, 1
        %s244 = scalar_select %p243, %s24, 1
        %s245 = smul.addr %s244, 8
        %s246 = scalar_lea.vmem %s0, %s245
        %p247 = pneg %p45
        %p248 = pneg %p42
        %s249 = sand.u32 %s58, 1
        %s250 = scalar_lea.sflag [#allocation3], %s249
        %s251 = sand.u32 %s58, 1
        %s252 = smul.addr %s251, 8
        %s253 = scalar_lea.vmem [#allocation2], %s252
        %p254 = pneg %p71
        %p255 = pneg %p68
        %s256 = sand.u32 %s84, 1
        %s257 = scalar_lea.sflag [#allocation6], %s256
        %s258 = sand.u32 %s84, 1
        %s259 = smul.addr %s258, 8
        %s260 = scalar_lea.vmem [#allocation5], %s259
        %p261 = pneg %p97
        %p262 = pneg %p94
        %p263 = scmp.lt.s32.totalorder %s24, 1
        %s264 = scalar_select %p263, %s24, 1
        %s265 = smul.addr %s264, 8
        %s266 = scalar_lea.vmem %s3, %s265
        %p267 = pneg %p123
        %p268 = pneg %p120
        %p269 = pneg %p149
        %p270 = pneg %p146
        %s271 = sand.u32 %s136, 1
        %s272 = scalar_lea.sflag [#allocation4], %s271
        %s273 = sand.u32 %s136, 1
        %s274 = smul.addr %s273, 8
        %s275 = scalar_lea.vmem [#allocation7], %s274
        %p276 = scmp.lt.s32.totalorder %s24, 1
        %s277 = scalar_select %p276, %s24, 1
        %s278 = smul.addr %s277, 8
        %s279 = scalar_lea.vmem %s0, %s278
        %p280 = scmp.lt.s32.totalorder %s24, 1
        %s281 = scalar_select %p280, %s24, 1
        %s282 = smul.addr %s281, 8
        %s283 = scalar_lea.vmem %s3, %s282
        %v284 = vld [vmem:[%s279] sm:$0xff]
        %v285 = vld [vmem:[%s229] sm:$0xff]
        %v286 = vmax.f32 %v284, 0.0
        %v287 = vmul.f32 %v284, %v285
        %v288 = vsub.f32 %v286, %v287
        %v289 = vand.u32 2147483647, %v284
        %v290 = vsub.f32 0.0, %v289
        %v291 = vmul.f32 %v290, 1.442695
        %v292 = vpow.pop %v291
        %v293 = vadd.f32 %v292, 1.0
        %v294 = vlog2.pop %v293
        %v295 = vmul.f32 %v294, 0.6931472
        %v296 = vmul.f32 -0.5, %v292
        %v297 = vadd.f32 %v296, 1.0
        %v298 = vmul.f32 %v297, %v292
        %v299 = vand.u32 2147483647, %v292
        %vm300 = vcmp.lt.f32.partialorder %v299, 0.0004427343
        %v301 = vsel %vm300, %v298, %v295
        %v302 = vadd.f32 %v288, %v301
        %s303 = smul.u32 %s24, 8
        %v304 = vlaneseq
        %v305 = vshrl.u32 %v304, 7
        %v306 = vstv %s303
        %v307 = vadd.s32 %v306, %v305
        %vm308 = vcmp.lt.s32.totalorder %v307, 13
        %v309 = vsel %vm308, %v302, 0.0
        %vm310 = vcmask 97280
        %v311 = vsel %vm310, %v309, 0.0
        %312 = vadd.xlane.f32.xlu0 %v311
        %v313 = vpop.xlane.xlu0 %312
        %v314 = vrot.slane %v313, 4
        %v315 = vadd.f32 %v313, %v314
        %v316 = vrot.slane %v315, 2
        %v317 = vadd.f32 %v315, %v316
        %v318 = vrot.slane %v317, 1
        %v319 = vadd.f32 %v317, %v318
        %s320 = vtos %v319
        %v321 = vld [vmem:[%s238] sm:$0xff]
        %vm322 = vcmask 80896
        %v323 = vsel %vm322, %v321, -inf
        %324 = vmax.xlane.f32.xlu0 %v323
        %v325 = vpop.xlane.xlu0 %324
        %v326 = vsub.f32 %v321, %v325
        %v327 = vmul.f32 %v326, 1.442695
        %v328 = vpow.pop %v327
        %v329 = vsel %vm322, %v328, 0.0
        %330 = vadd.xlane.f32.xlu0 %v329
        %v331 = vpop.xlane.xlu0 %330
        %v332 = vlog2.pop %v331
        %v333 = vmul.f32 %v332, 0.6931472
        %v334 = vadd.f32 %v333, %v325
        %v335 = vld [vmem:[%s283] sm:$0xff]
        %v336 = vlaneseq
        %v337 = vand.u32 %v336, 127
        %338 = vset.pattern.permute.xlu0 0
        %339 = vperm.xlu0 %338, %v335
        %v340 = vpop.permute.xlu0 %339
        %vm341 = vcmp.eq.s32.totalorder %v337, %v340
        %v342 = vsel %vm341, %v321, 0.0
        %v343 = vsel %vm322, %v342, 0.0
        %344 = vadd.xlane.f32.xlu0 %v343
        %v345 = vpop.xlane.xlu0 %344
        %vm346 = vcmp.ne.s32.totalorder %v335, 4294967196
        %vm347 = vmand %vm308, %vm346
        %v348 = vsub.f32 %v334, %v345
        %v349 = vsel %vm347, %v348, 0.0
        %vm350 = vcmask 7168
        %v351 = vsel %vm350, %v349, 0.0
        %352 = vadd.xlane.f32.xlu0 %v351
        %v353 = vpop.xlane.xlu0 %352
        %v354 = vrot.slane %v353, 4
        %v355 = vadd.f32 %v353, %v354
        %v356 = vrot.slane %v355, 2
        %v357 = vadd.f32 %v355, %v356
        %v358 = vrot.slane %v357, 1
        %v359 = vadd.f32 %v357, %v358
        %s360 = vtos %v359
        %v361 = vsel %vm347, 1, 0
        %v362 = vcvt.s32.f32 %v361
        %v363 = vsel %vm350, %v362, 0.0
        %364 = vadd.xlane.f32.xlu0 %v363
        %v365 = vpop.xlane.xlu0 %364
        %v366 = vrot.slane %v365, 4
        %v367 = vadd.f32 %v365, %v366
        %v368 = vrot.slane %v367, 2
        %v369 = vadd.f32 %v367, %v368
        %v370 = vrot.slane %v369, 1
        %v371 = vadd.f32 %v369, %v370
        %s372 = vtos %v371
        %vm373 = vcmp.eq.s32.totalorder %v337, 0
        %vm374 = vcmp.eq.s32.totalorder %v337, 1
        %v375 = vstv %s360
        %v376 = vstv %s372
        %v377 = vsel %vm374, %v375, %v376
        %v378 = vstv %s320
        %v379 = vsel %vm373, %v378, %v377
        %vm380 = vcmp.eq.s32.totalorder %v305, 0
        %vm381 = vcmp.lt.s32.totalorder %v337, 3
        %vm382 = vmand %vm380, %vm381
        %v383 = vsel %vm382, %v379, 0.0
        %384 = vst [vmem:[%s275] sm:$0xff] %v383
        %s385 = sand.u32 %s136, 1
        %s386 = scalar_lea.sflag [#allocation4], %s385
        %s387 = sand.u32 %s136, 1
        %s388 = smul.addr %s387, 8
        %s389 = scalar_lea.vmem [#allocation7], %s388
        // Predicated region
        $region45: #{tpu_custom_call.1} parent=35 // pred_check
          %p390 = pneg %p146
        $region46: #{tpu_custom_call.1} parent=35 // pred_check_branch
          %392 = sbr.rel (%p390) target = $region48
        $region47: #{tpu_custom_call.1} parent=35 // pred_region
          %s394 = ssub.s32 128, 128
          %395 = vsyncadd %s386, %s394
          %s396 = smul.addr %s24, 128
          %s397 = scalar_lea.hbm %s4, %s396
          %s399 = sshll.u32 %s389, 4
          %s400 = int_to_ptr.vmem [resolvable:$true] %s399
          %402 = dma.vmem_to_hbm [thread:$0]  %s400, 128, %s397, %s386
        $region48: #{tpu_custom_call.1} parent=35 // pred_fallthru
          _
      $region36: #{tpu_custom_call.1} parent=5 // pred_fallthru
        _
      %p403 = scmp.le.s32.totalorder 2, %s19
      // Predicated region
      $region49: #{tpu_custom_call.1} parent=5 // pred_check
        %p404 = pneg %p403
      $region50: #{tpu_custom_call.1} parent=5 // pred_check_branch
        %406 = sbr.rel (%p404) target = $region52
      $region51: #{tpu_custom_call.1} parent=5 // pred_region
        %s407 = ssub.s32 %s19, 2
        // Predicated region
        $region53: #{tpu_custom_call.1} parent=51 // pred_check
          %p408 = pneg %p152
        $region54: #{tpu_custom_call.1} parent=51 // pred_check_branch
          %410 = sbr.rel (%p408) target = $region56
        $region55: #{tpu_custom_call.1} parent=51 // pred_region
          %s411 = sand.u32 %s137, 1
          %s412 = scalar_lea.sflag [#allocation4], %s411
          %s413 = sand.u32 %s137, 1
          %s414 = smul.addr %s413, 8
          %s415 = scalar_lea.vmem [#allocation7], %s414
          %416 = dma.done %s412, 128
        $region56: #{tpu_custom_call.1} parent=51 // pred_fallthru
          _
      $region52: #{tpu_custom_call.1} parent=5 // pred_fallthru
        _
    $region6: #{tpu_custom_call.1} parent=1 // loop_footer
      %s23 = sadd.s32 1, %s19
    $region7: #{tpu_custom_call.1} parent=1 // loop_footer_branch
      %18 = sbr.rel target = $region3
    $region8: #{tpu_custom_call.1} parent=1 // loop_exit
      _
    %417 = vsyncpa [#allocation3], 1
    %s418 = scalar_lea.sflag [#allocation3], 1
    %419 = vsyncpa %s418, 1
    %420 = vsyncpa [#allocation6], 1
    %s421 = scalar_lea.sflag [#allocation6], 1
    %422 = vsyncpa %s421, 1
    %423 = vsyncpa [#allocation4], 1
    %s424 = scalar_lea.sflag [#allocation4], 1
    %425 = vsyncpa %s424, 1

</llo_original>
